<compile_context>
chip_gen: v6e
topology: v6e:2x2x1
jax: 0.10.0
libtpu: 0.0.40
codegen_flags: <defaults>
</compile_context>

<pallas_src>
import math

import jax
import jax.numpy as jnp
from jax.experimental import pallas as pl
from jax.experimental.pallas import tpu as pltpu

SIMPLE_PRIOR_SIGMA = 0.1

# Compile-time-folded KL constants.
_SIGMA_P_SAFE = SIMPLE_PRIOR_SIGMA + 1e-8
_LOG_SIGMA_P_SAFE = math.log(_SIGMA_P_SAFE)
_INV_TWO_SIGMA_P_SQ = 1.0 / (2.0 * _SIGMA_P_SAFE * _SIGMA_P_SAFE)


def _softplus(x):
    # Numerically stable softplus: max(x, 0) + log1p(exp(-|x|)).
    return jnp.maximum(x, 0.0) + jnp.log1p(jnp.exp(-jnp.abs(x)))


def _kl_term(mu, sigma):
    # KL(N(mu, sigma_q^2) || N(0, sigma_p^2)) summed over elements; sigma is the
    # SAME softplus(rho) used for sampling (shared EUP work).
    sq = sigma + 1e-8
    return jnp.sum(
        _LOG_SIGMA_P_SAFE - jnp.log(sq)
        + (sq * sq + mu * mu) * _INV_TWO_SIGMA_P_SQ
        - 0.5)


# ----------------------------------------------------------------------------
# Single fused kernel: fc1+relu -> fc2+relu -> fc3, plus total KL.
# All intermediates stay in VMEM; only [B, out] logits and a (1,1) KL scalar
# are written back.
# ----------------------------------------------------------------------------
def _fused_mlp_kernel(
    x_ref,                    # [B, D]
    w1_ref, b1_ref,           # [3, D, H], [3, 1, H]   (mu, rho, eps) stacked
    w2_ref, b2_ref,           # [3, H, H], [3, 1, H]
    w3_ref, b3_ref,           # [3, H, O], [3, 1, O]
    out_ref,                  # [B, O]
    kl_ref,                   # [1, 1]
):
    def sampled_linear(h, w_ref, b_ref):
        wm, wr, ew = w_ref[0], w_ref[1], w_ref[2]      # [in, out] each
        bm, br, eb = b_ref[0], b_ref[1], b_ref[2]      # [1, out] each
        w_sigma = _softplus(wr)                        # reused for sample + KL
        b_sigma = _softplus(br)
        w = wm + w_sigma * ew
        b = bm + b_sigma * eb
        y = jnp.dot(h, w, preferred_element_type=jnp.float32) + b
        kl = _kl_term(wm, w_sigma) + _kl_term(bm, b_sigma)
        return y, kl

    h1, kl1 = sampled_linear(x_ref[...], w1_ref, b1_ref)
    h1 = jnp.maximum(h1, 0.0)
    h2, kl2 = sampled_linear(h1, w2_ref, b2_ref)
    h2 = jnp.maximum(h2, 0.0)
    y, kl3 = sampled_linear(h2, w3_ref, b3_ref)

    out_ref[...] = y.astype(out_ref.dtype)
    kl_ref[...] = (kl1 + kl2 + kl3).reshape(1, 1)


# ----------------------------------------------------------------------------
# Parameter init (matches BayesianLinear.reset_parameters semantics)
# ----------------------------------------------------------------------------
def init_bayesian_linear(key, in_features, out_features):
    k_w, k_b = jax.random.split(key)
    # kaiming_uniform_ with a=sqrt(5): bound = 1/sqrt(fan_in)
    bound = 1.0 / math.sqrt(in_features)
    w_mu = jax.random.uniform(
        k_w, (out_features, in_features), jnp.float32, -bound, bound)
    w_rho = jnp.full((out_features, in_features), -6.0, jnp.float32)
    b_mu = jax.random.uniform(k_b, (1, out_features), jnp.float32, -bound, bound)
    b_rho = jnp.full((1, out_features), -6.0, jnp.float32)
    return dict(w_mu=w_mu, w_rho=w_rho, b_mu=b_mu, b_rho=b_rho)


def sample_eps(key, params):
    # TODO(synk): for large layers, generate eps in-kernel from a scalar seed
    # (pltpu.prng_seed + pltpu.prng_random_bits) to cut weight-sized HBM reads.
    k_w, k_b = jax.random.split(key)
    eps_w = jax.random.normal(k_w, params["w_mu"].shape, jnp.float32)  # [out, in]
    eps_b = jax.random.normal(k_b, params["b_mu"].shape, jnp.float32)  # [1, out]
    return eps_w, eps_b


def prepare_layer(params, eps_w, eps_b):
    """Stack (mu, rho, eps) so each layer is 2 DMAs instead of 6.

    Weights are transposed to [in, out] so the kernel feeds the MXU directly
    with jnp.dot(x, w) -- no in-kernel transpose.  No padding: real shapes go
    to VMEM as full-array blocks.
    """
    w_stack = jnp.stack(
        [params["w_mu"].T, params["w_rho"].T, eps_w.T], axis=0)   # [3, in, out]
    b_stack = jnp.stack(
        [params["b_mu"], params["b_rho"], eps_b], axis=0)         # [3, 1, out]
    return w_stack, b_stack


# ----------------------------------------------------------------------------
# BayesianMLP forward: flatten -> fc1+relu -> fc2+relu -> fc3  (+ total KL)
# ----------------------------------------------------------------------------
def bayesian_mlp_forward(x_nchw, layer_stacks):
    batch = x_nchw.shape[0]
    x = x_nchw.reshape(batch, -1)                     # x.view(x.size(0), -1)
    out_features = layer_stacks[-1][0].shape[2]       # w_stack: [3, in, out]

    vmem = pl.BlockSpec(memory_space=pltpu.MemorySpace.VMEM)

    inputs = [x]
    for w_stack, b_stack in layer_stacks:
        inputs += [w_stack, b_stack]

    logits, kl = pl.pallas_call(
        _fused_mlp_kernel,
        out_shape=(jax.ShapeDtypeStruct((batch, out_features), jnp.float32),
                   jax.ShapeDtypeStruct((1, 1), jnp.float32)),
        in_specs=[vmem] * len(inputs),
        out_specs=(vmem, vmem),
    )(*inputs)

    return logits, kl[0, 0]


# ----------------------------------------------------------------------------
# Pure-JAX reference of the module's forward (for verification only)
# ----------------------------------------------------------------------------
def _reference_forward(x_nchw, params_list, eps_list):
    x = x_nchw.reshape(x_nchw.shape[0], -1)
    total_kl = jnp.zeros((), jnp.float32)
    sp = SIMPLE_PRIOR_SIGMA + 1e-8
    for i, (p, (eps_w, eps_b)) in enumerate(zip(params_list, eps_list)):
        w_sigma = jnp.log1p(jnp.exp(p["w_rho"]))
        b_sigma = jnp.log1p(jnp.exp(p["b_rho"]))
        w = p["w_mu"] + w_sigma * eps_w
        b = p["b_mu"] + b_sigma * eps_b
        x = jnp.dot(x, w.T, precision=jax.lax.Precision.HIGHEST) + b
        if i < len(params_list) - 1:
            x = jnp.maximum(x, 0.0)
        for mu, sig in ((p["w_mu"], w_sigma), (p["b_mu"], b_sigma)):
            sq = sig + 1e-8
            total_kl += jnp.sum(
                jnp.log(sp / sq) + (sq ** 2 + mu ** 2) / (2.0 * sp ** 2) - 0.5)
    return x, total_kl


if __name__ == "__main__":
    # Small shapes: batch=8, C=1, H=W=8 -> input_dim=64, hidden=32, output=10
    batch, c, h, w = 8, 1, 8, 8
    input_dim, hidden_dim, output_dim = c * h * w, 32, 10

    root = jax.random.PRNGKey(0)
    k_x, k1, k2, k3, ke1, ke2, ke3 = jax.random.split(root, 7)

    x = jax.random.normal(k_x, (batch, c, h, w), jnp.float32)

    params = [
        init_bayesian_linear(k1, input_dim, hidden_dim),
        init_bayesian_linear(k2, hidden_dim, hidden_dim),
        init_bayesian_linear(k3, hidden_dim, output_dim),
    ]
    eps = [sample_eps(k, p) for k, p in zip((ke1, ke2, ke3), params)]

    # Stack (mu, rho, eps) per layer: 7 input DMAs total, no padding.
    layer_stacks = [prepare_layer(p, ew, eb) for p, (ew, eb) in zip(params, eps)]

    fwd = jax.jit(bayesian_mlp_forward)
    logits, total_kl = fwd(x, layer_stacks)
    jax.block_until_ready((logits, total_kl))

    # Verify against the pure-JAX reference of the module's forward.
    ref_logits, ref_kl = _reference_forward(x, params, eps)
    assert logits.shape == (batch, output_dim)
    assert logits.dtype == jnp.float32
    assert jnp.allclose(logits, ref_logits, rtol=1e-4, atol=1e-4)
    assert jnp.allclose(total_kl, ref_kl, rtol=1e-4, atol=1e-2)

    print("KERNEL_OK")
</pallas_src>

<mosaic_0001>
module attributes {stable_mosaic.version = 11 : i64} {
  func.func @_fused_mlp_kernel(%arg0: memref<8x64xf32, #tpu.memory_space<vmem>>, %arg1: memref<3x64x32xf32, #tpu.memory_space<vmem>>, %arg2: memref<3x1x32xf32, #tpu.memory_space<vmem>>, %arg3: memref<3x32x32xf32, #tpu.memory_space<vmem>>, %arg4: memref<3x1x32xf32, #tpu.memory_space<vmem>>, %arg5: memref<3x32x10xf32, #tpu.memory_space<vmem>>, %arg6: memref<3x1x10xf32, #tpu.memory_space<vmem>>, %arg7: memref<8x10xf32, #tpu.memory_space<vmem>>, %arg8: memref<1x1xf32, #tpu.memory_space<vmem>>) attributes {dimension_semantics = [], scalar_prefetch = 0 : i64, scratch_operands = 0 : i64, tpu.core_type = #tpu.core_type<tc>} {
    %c0 = arith.constant 0 : index
    %c0_0 = arith.constant 0 : index
    %0 = vector.load %arg0[%c0, %c0_0] : memref<8x64xf32, #tpu.memory_space<vmem>>, vector<8x64xf32>
    %c0_1 = arith.constant 0 : index
    %c0_2 = arith.constant 0 : index
    %c0_3 = arith.constant 0 : index
    %1 = vector.load %arg1[%c0_1, %c0_2, %c0_3] : memref<3x64x32xf32, #tpu.memory_space<vmem>>, vector<1x64x32xf32>
    %2 = vector.shape_cast %1 : vector<1x64x32xf32> to vector<64x32xf32>
    %c1 = arith.constant 1 : index
    %c0_4 = arith.constant 0 : index
    %c0_5 = arith.constant 0 : index
    %3 = vector.load %arg1[%c1, %c0_4, %c0_5] : memref<3x64x32xf32, #tpu.memory_space<vmem>>, vector<1x64x32xf32>
    %4 = vector.shape_cast %3 : vector<1x64x32xf32> to vector<64x32xf32>
    %c2 = arith.constant 2 : index
    %c0_6 = arith.constant 0 : index
    %c0_7 = arith.constant 0 : index
    %5 = vector.load %arg1[%c2, %c0_6, %c0_7] : memref<3x64x32xf32, #tpu.memory_space<vmem>>, vector<1x64x32xf32>
    %6 = vector.shape_cast %5 : vector<1x64x32xf32> to vector<64x32xf32>
    %c0_8 = arith.constant 0 : index
    %c0_9 = arith.constant 0 : index
    %c0_10 = arith.constant 0 : index
    %7 = vector.load %arg2[%c0_8, %c0_9, %c0_10] : memref<3x1x32xf32, #tpu.memory_space<vmem>>, vector<1x1x32xf32>
    %8 = vector.shape_cast %7 : vector<1x1x32xf32> to vector<1x32xf32>
    %c1_11 = arith.constant 1 : index
    %c0_12 = arith.constant 0 : index
    %c0_13 = arith.constant 0 : index
    %9 = vector.load %arg2[%c1_11, %c0_12, %c0_13] : memref<3x1x32xf32, #tpu.memory_space<vmem>>, vector<1x1x32xf32>
    %10 = vector.shape_cast %9 : vector<1x1x32xf32> to vector<1x32xf32>
    %c2_14 = arith.constant 2 : index
    %c0_15 = arith.constant 0 : index
    %c0_16 = arith.constant 0 : index
    %11 = vector.load %arg2[%c2_14, %c0_15, %c0_16] : memref<3x1x32xf32, #tpu.memory_space<vmem>>, vector<1x1x32xf32>
    %12 = vector.shape_cast %11 : vector<1x1x32xf32> to vector<1x32xf32>
    %cst = arith.constant 0.000000e+00 : f32
    %13 = vector.broadcast %cst : f32 to vector<64x32xf32>
    %14 = arith.maximumf %4, %13 : vector<64x32xf32>
    %15 = math.absf %4 : vector<64x32xf32>
    %cst_17 = arith.constant 0.000000e+00 : f32
    %16 = vector.broadcast %cst_17 : f32 to vector<64x32xf32>
    %17 = arith.subf %16, %15 : vector<64x32xf32>
    %18 = math.exp %17 : vector<64x32xf32>
    %19 = math.log1p %18 : vector<64x32xf32>
    %20 = arith.addf %14, %19 : vector<64x32xf32>
    %cst_18 = arith.constant 0.000000e+00 : f32
    %21 = vector.broadcast %cst_18 : f32 to vector<1x32xf32>
    %22 = arith.maximumf %10, %21 : vector<1x32xf32>
    %23 = math.absf %10 : vector<1x32xf32>
    %cst_19 = arith.constant 0.000000e+00 : f32
    %24 = vector.broadcast %cst_19 : f32 to vector<1x32xf32>
    %25 = arith.subf %24, %23 : vector<1x32xf32>
    %26 = math.exp %25 : vector<1x32xf32>
    %27 = math.log1p %26 : vector<1x32xf32>
    %28 = arith.addf %22, %27 : vector<1x32xf32>
    %29 = arith.mulf %20, %6 : vector<64x32xf32>
    %30 = arith.addf %2, %29 : vector<64x32xf32>
    %31 = arith.mulf %28, %12 : vector<1x32xf32>
    %32 = arith.addf %8, %31 : vector<1x32xf32>
    %cst_20 = arith.constant dense<0.000000e+00> : vector<8x32xf32>
    %33 = tpu.matmul %0, %30, %cst_20 {dimension_numbers = #tpu.dot_dimension_numbers<[1], [0], [0], [1], [0, 0, 1, 1], [], []>} : vector<8x64xf32>, vector<64x32xf32>, vector<8x32xf32> -> vector<8x32xf32>
    %34 = vector.broadcast %32 : vector<1x32xf32> to vector<8x32xf32>
    %35 = arith.addf %33, %34 : vector<8x32xf32>
    %cst_21 = arith.constant 9.99999993E-9 : f32
    %36 = vector.broadcast %cst_21 : f32 to vector<64x32xf32>
    %37 = arith.addf %20, %36 : vector<64x32xf32>
    %38 = math.log %37 : vector<64x32xf32>
    %cst_22 = arith.constant -2.30258489 : f32
    %39 = vector.broadcast %cst_22 : f32 to vector<64x32xf32>
    %40 = arith.subf %39, %38 : vector<64x32xf32>
    %41 = arith.mulf %37, %37 : vector<64x32xf32>
    %42 = arith.mulf %2, %2 : vector<64x32xf32>
    %43 = arith.addf %41, %42 : vector<64x32xf32>
    %cst_23 = arith.constant 49.9999886 : f32
    %44 = vector.broadcast %cst_23 : f32 to vector<64x32xf32>
    %45 = arith.mulf %43, %44 : vector<64x32xf32>
    %46 = arith.addf %40, %45 : vector<64x32xf32>
    %cst_24 = arith.constant 5.000000e-01 : f32
    %47 = vector.broadcast %cst_24 : f32 to vector<64x32xf32>
    %48 = arith.subf %46, %47 : vector<64x32xf32>
    %49 = vector.shape_cast %48 : vector<64x32xf32> to vector<1x64x32xf32>
    %cst_25 = arith.constant dense<0.000000e+00> : vector<1xf32>
    %50 = vector.multi_reduction <add>, %49, %cst_25 [1, 2] : vector<1x64x32xf32> to vector<1xf32>
    %51 = vector.shape_cast %50 : vector<1xf32> to vector<1x1x1xf32>
    %52 = vector.extract %51[0, 0, 0] : f32 from vector<1x1x1xf32>
    %cst_26 = arith.constant 9.99999993E-9 : f32
    %53 = vector.broadcast %cst_26 : f32 to vector<1x32xf32>
    %54 = arith.addf %28, %53 : vector<1x32xf32>
    %55 = math.log %54 : vector<1x32xf32>
    %cst_27 = arith.constant -2.30258489 : f32
    %56 = vector.broadcast %cst_27 : f32 to vector<1x32xf32>
    %57 = arith.subf %56, %55 : vector<1x32xf32>
    %58 = arith.mulf %54, %54 : vector<1x32xf32>
    %59 = arith.mulf %8, %8 : vector<1x32xf32>
    %60 = arith.addf %58, %59 : vector<1x32xf32>
    %cst_28 = arith.constant 49.9999886 : f32
    %61 = vector.broadcast %cst_28 : f32 to vector<1x32xf32>
    %62 = arith.mulf %60, %61 : vector<1x32xf32>
    %63 = arith.addf %57, %62 : vector<1x32xf32>
    %cst_29 = arith.constant 5.000000e-01 : f32
    %64 = vector.broadcast %cst_29 : f32 to vector<1x32xf32>
    %65 = arith.subf %63, %64 : vector<1x32xf32>
    %66 = vector.shape_cast %65 : vector<1x32xf32> to vector<1x1x32xf32>
    %cst_30 = arith.constant dense<0.000000e+00> : vector<1xf32>
    %67 = vector.multi_reduction <add>, %66, %cst_30 [1, 2] : vector<1x1x32xf32> to vector<1xf32>
    %68 = vector.shape_cast %67 : vector<1xf32> to vector<1x1x1xf32>
    %69 = vector.extract %68[0, 0, 0] : f32 from vector<1x1x1xf32>
    %70 = arith.addf %52, %69 : f32
    %cst_31 = arith.constant 0.000000e+00 : f32
    %71 = vector.broadcast %cst_31 : f32 to vector<8x32xf32>
    %72 = arith.maximumf %35, %71 : vector<8x32xf32>
    %c0_32 = arith.constant 0 : index
    %c0_33 = arith.constant 0 : index
    %c0_34 = arith.constant 0 : index
    %73 = vector.load %arg3[%c0_32, %c0_33, %c0_34] : memref<3x32x32xf32, #tpu.memory_space<vmem>>, vector<1x32x32xf32>
    %74 = vector.shape_cast %73 : vector<1x32x32xf32> to vector<32x32xf32>
    %c1_35 = arith.constant 1 : index
    %c0_36 = arith.constant 0 : index
    %c0_37 = arith.constant 0 : index
    %75 = vector.load %arg3[%c1_35, %c0_36, %c0_37] : memref<3x32x32xf32, #tpu.memory_space<vmem>>, vector<1x32x32xf32>
    %76 = vector.shape_cast %75 : vector<1x32x32xf32> to vector<32x32xf32>
    %c2_38 = arith.constant 2 : index
    %c0_39 = arith.constant 0 : index
    %c0_40 = arith.constant 0 : index
    %77 = vector.load %arg3[%c2_38, %c0_39, %c0_40] : memref<3x32x32xf32, #tpu.memory_space<vmem>>, vector<1x32x32xf32>
    %78 = vector.shape_cast %77 : vector<1x32x32xf32> to vector<32x32xf32>
    %c0_41 = arith.constant 0 : index
    %c0_42 = arith.constant 0 : index
    %c0_43 = arith.constant 0 : index
    %79 = vector.load %arg4[%c0_41, %c0_42, %c0_43] : memref<3x1x32xf32, #tpu.memory_space<vmem>>, vector<1x1x32xf32>
    %80 = vector.shape_cast %79 : vector<1x1x32xf32> to vector<1x32xf32>
    %c1_44 = arith.constant 1 : index
    %c0_45 = arith.constant 0 : index
    %c0_46 = arith.constant 0 : index
    %81 = vector.load %arg4[%c1_44, %c0_45, %c0_46] : memref<3x1x32xf32, #tpu.memory_space<vmem>>, vector<1x1x32xf32>
    %82 = vector.shape_cast %81 : vector<1x1x32xf32> to vector<1x32xf32>
    %c2_47 = arith.constant 2 : index
    %c0_48 = arith.constant 0 : index
    %c0_49 = arith.constant 0 : index
    %83 = vector.load %arg4[%c2_47, %c0_48, %c0_49] : memref<3x1x32xf32, #tpu.memory_space<vmem>>, vector<1x1x32xf32>
    %84 = vector.shape_cast %83 : vector<1x1x32xf32> to vector<1x32xf32>
    %cst_50 = arith.constant 0.000000e+00 : f32
    %85 = vector.broadcast %cst_50 : f32 to vector<32x32xf32>
    %86 = arith.maximumf %76, %85 : vector<32x32xf32>
    %87 = math.absf %76 : vector<32x32xf32>
    %cst_51 = arith.constant 0.000000e+00 : f32
    %88 = vector.broadcast %cst_51 : f32 to vector<32x32xf32>
    %89 = arith.subf %88, %87 : vector<32x32xf32>
    %90 = math.exp %89 : vector<32x32xf32>
    %91 = math.log1p %90 : vector<32x32xf32>
    %92 = arith.addf %86, %91 : vector<32x32xf32>
    %cst_52 = arith.constant 0.000000e+00 : f32
    %93 = vector.broadcast %cst_52 : f32 to vector<1x32xf32>
    %94 = arith.maximumf %82, %93 : vector<1x32xf32>
    %95 = math.absf %82 : vector<1x32xf32>
    %cst_53 = arith.constant 0.000000e+00 : f32
    %96 = vector.broadcast %cst_53 : f32 to vector<1x32xf32>
    %97 = arith.subf %96, %95 : vector<1x32xf32>
    %98 = math.exp %97 : vector<1x32xf32>
    %99 = math.log1p %98 : vector<1x32xf32>
    %100 = arith.addf %94, %99 : vector<1x32xf32>
    %101 = arith.mulf %92, %78 : vector<32x32xf32>
    %102 = arith.addf %74, %101 : vector<32x32xf32>
    %103 = arith.mulf %100, %84 : vector<1x32xf32>
    %104 = arith.addf %80, %103 : vector<1x32xf32>
    %cst_54 = arith.constant dense<0.000000e+00> : vector<8x32xf32>
    %105 = tpu.matmul %72, %102, %cst_54 {dimension_numbers = #tpu.dot_dimension_numbers<[1], [0], [0], [1], [0, 0, 1, 1], [], []>} : vector<8x32xf32>, vector<32x32xf32>, vector<8x32xf32> -> vector<8x32xf32>
    %106 = vector.broadcast %104 : vector<1x32xf32> to vector<8x32xf32>
    %107 = arith.addf %105, %106 : vector<8x32xf32>
    %cst_55 = arith.constant 9.99999993E-9 : f32
    %108 = vector.broadcast %cst_55 : f32 to vector<32x32xf32>
    %109 = arith.addf %92, %108 : vector<32x32xf32>
    %110 = math.log %109 : vector<32x32xf32>
    %cst_56 = arith.constant -2.30258489 : f32
    %111 = vector.broadcast %cst_56 : f32 to vector<32x32xf32>
    %112 = arith.subf %111, %110 : vector<32x32xf32>
    %113 = arith.mulf %109, %109 : vector<32x32xf32>
    %114 = arith.mulf %74, %74 : vector<32x32xf32>
    %115 = arith.addf %113, %114 : vector<32x32xf32>
    %cst_57 = arith.constant 49.9999886 : f32
    %116 = vector.broadcast %cst_57 : f32 to vector<32x32xf32>
    %117 = arith.mulf %115, %116 : vector<32x32xf32>
    %118 = arith.addf %112, %117 : vector<32x32xf32>
    %cst_58 = arith.constant 5.000000e-01 : f32
    %119 = vector.broadcast %cst_58 : f32 to vector<32x32xf32>
    %120 = arith.subf %118, %119 : vector<32x32xf32>
    %121 = vector.shape_cast %120 : vector<32x32xf32> to vector<1x32x32xf32>
    %cst_59 = arith.constant dense<0.000000e+00> : vector<1xf32>
    %122 = vector.multi_reduction <add>, %121, %cst_59 [1, 2] : vector<1x32x32xf32> to vector<1xf32>
    %123 = vector.shape_cast %122 : vector<1xf32> to vector<1x1x1xf32>
    %124 = vector.extract %123[0, 0, 0] : f32 from vector<1x1x1xf32>
    %cst_60 = arith.constant 9.99999993E-9 : f32
    %125 = vector.broadcast %cst_60 : f32 to vector<1x32xf32>
    %126 = arith.addf %100, %125 : vector<1x32xf32>
    %127 = math.log %126 : vector<1x32xf32>
    %cst_61 = arith.constant -2.30258489 : f32
    %128 = vector.broadcast %cst_61 : f32 to vector<1x32xf32>
    %129 = arith.subf %128, %127 : vector<1x32xf32>
    %130 = arith.mulf %126, %126 : vector<1x32xf32>
    %131 = arith.mulf %80, %80 : vector<1x32xf32>
    %132 = arith.addf %130, %131 : vector<1x32xf32>
    %cst_62 = arith.constant 49.9999886 : f32
    %133 = vector.broadcast %cst_62 : f32 to vector<1x32xf32>
    %134 = arith.mulf %132, %133 : vector<1x32xf32>
    %135 = arith.addf %129, %134 : vector<1x32xf32>
    %cst_63 = arith.constant 5.000000e-01 : f32
    %136 = vector.broadcast %cst_63 : f32 to vector<1x32xf32>
    %137 = arith.subf %135, %136 : vector<1x32xf32>
    %138 = vector.shape_cast %137 : vector<1x32xf32> to vector<1x1x32xf32>
    %cst_64 = arith.constant dense<0.000000e+00> : vector<1xf32>
    %139 = vector.multi_reduction <add>, %138, %cst_64 [1, 2] : vector<1x1x32xf32> to vector<1xf32>
    %140 = vector.shape_cast %139 : vector<1xf32> to vector<1x1x1xf32>
    %141 = vector.extract %140[0, 0, 0] : f32 from vector<1x1x1xf32>
    %142 = arith.addf %124, %141 : f32
    %cst_65 = arith.constant 0.000000e+00 : f32
    %143 = vector.broadcast %cst_65 : f32 to vector<8x32xf32>
    %144 = arith.maximumf %107, %143 : vector<8x32xf32>
    %c0_66 = arith.constant 0 : index
    %c0_67 = arith.constant 0 : index
    %c0_68 = arith.constant 0 : index
    %145 = vector.load %arg5[%c0_66, %c0_67, %c0_68] : memref<3x32x10xf32, #tpu.memory_space<vmem>>, vector<1x32x10xf32>
    %146 = vector.shape_cast %145 : vector<1x32x10xf32> to vector<32x10xf32>
    %c1_69 = arith.constant 1 : index
    %c0_70 = arith.constant 0 : index
    %c0_71 = arith.constant 0 : index
    %147 = vector.load %arg5[%c1_69, %c0_70, %c0_71] : memref<3x32x10xf32, #tpu.memory_space<vmem>>, vector<1x32x10xf32>
    %148 = vector.shape_cast %147 : vector<1x32x10xf32> to vector<32x10xf32>
    %c2_72 = arith.constant 2 : index
    %c0_73 = arith.constant 0 : index
    %c0_74 = arith.constant 0 : index
    %149 = vector.load %arg5[%c2_72, %c0_73, %c0_74] : memref<3x32x10xf32, #tpu.memory_space<vmem>>, vector<1x32x10xf32>
    %150 = vector.shape_cast %149 : vector<1x32x10xf32> to vector<32x10xf32>
    %c0_75 = arith.constant 0 : index
    %c0_76 = arith.constant 0 : index
    %c0_77 = arith.constant 0 : index
    %151 = vector.load %arg6[%c0_75, %c0_76, %c0_77] : memref<3x1x10xf32, #tpu.memory_space<vmem>>, vector<1x1x10xf32>
    %152 = vector.shape_cast %151 : vector<1x1x10xf32> to vector<1x10xf32>
    %c1_78 = arith.constant 1 : index
    %c0_79 = arith.constant 0 : index
    %c0_80 = arith.constant 0 : index
    %153 = vector.load %arg6[%c1_78, %c0_79, %c0_80] : memref<3x1x10xf32, #tpu.memory_space<vmem>>, vector<1x1x10xf32>
    %154 = vector.shape_cast %153 : vector<1x1x10xf32> to vector<1x10xf32>
    %c2_81 = arith.constant 2 : index
    %c0_82 = arith.constant 0 : index
    %c0_83 = arith.constant 0 : index
    %155 = vector.load %arg6[%c2_81, %c0_82, %c0_83] : memref<3x1x10xf32, #tpu.memory_space<vmem>>, vector<1x1x10xf32>
    %156 = vector.shape_cast %155 : vector<1x1x10xf32> to vector<1x10xf32>
    %cst_84 = arith.constant 0.000000e+00 : f32
    %157 = vector.broadcast %cst_84 : f32 to vector<32x10xf32>
    %158 = arith.maximumf %148, %157 : vector<32x10xf32>
    %159 = math.absf %148 : vector<32x10xf32>
    %cst_85 = arith.constant 0.000000e+00 : f32
    %160 = vector.broadcast %cst_85 : f32 to vector<32x10xf32>
    %161 = arith.subf %160, %159 : vector<32x10xf32>
    %162 = math.exp %161 : vector<32x10xf32>
    %163 = math.log1p %162 : vector<32x10xf32>
    %164 = arith.addf %158, %163 : vector<32x10xf32>
    %cst_86 = arith.constant 0.000000e+00 : f32
    %165 = vector.broadcast %cst_86 : f32 to vector<1x10xf32>
    %166 = arith.maximumf %154, %165 : vector<1x10xf32>
    %167 = math.absf %154 : vector<1x10xf32>
    %cst_87 = arith.constant 0.000000e+00 : f32
    %168 = vector.broadcast %cst_87 : f32 to vector<1x10xf32>
    %169 = arith.subf %168, %167 : vector<1x10xf32>
    %170 = math.exp %169 : vector<1x10xf32>
    %171 = math.log1p %170 : vector<1x10xf32>
    %172 = arith.addf %166, %171 : vector<1x10xf32>
    %173 = arith.mulf %164, %150 : vector<32x10xf32>
    %174 = arith.addf %146, %173 : vector<32x10xf32>
    %175 = arith.mulf %172, %156 : vector<1x10xf32>
    %176 = arith.addf %152, %175 : vector<1x10xf32>
    %cst_88 = arith.constant dense<0.000000e+00> : vector<8x10xf32>
    %177 = tpu.matmul %144, %174, %cst_88 {dimension_numbers = #tpu.dot_dimension_numbers<[1], [0], [0], [1], [0, 0, 1, 1], [], []>} : vector<8x32xf32>, vector<32x10xf32>, vector<8x10xf32> -> vector<8x10xf32>
    %178 = vector.broadcast %176 : vector<1x10xf32> to vector<8x10xf32>
    %179 = arith.addf %177, %178 : vector<8x10xf32>
    %cst_89 = arith.constant 9.99999993E-9 : f32
    %180 = vector.broadcast %cst_89 : f32 to vector<32x10xf32>
    %181 = arith.addf %164, %180 : vector<32x10xf32>
    %182 = math.log %181 : vector<32x10xf32>
    %cst_90 = arith.constant -2.30258489 : f32
    %183 = vector.broadcast %cst_90 : f32 to vector<32x10xf32>
    %184 = arith.subf %183, %182 : vector<32x10xf32>
    %185 = arith.mulf %181, %181 : vector<32x10xf32>
    %186 = arith.mulf %146, %146 : vector<32x10xf32>
    %187 = arith.addf %185, %186 : vector<32x10xf32>
    %cst_91 = arith.constant 49.9999886 : f32
    %188 = vector.broadcast %cst_91 : f32 to vector<32x10xf32>
    %189 = arith.mulf %187, %188 : vector<32x10xf32>
    %190 = arith.addf %184, %189 : vector<32x10xf32>
    %cst_92 = arith.constant 5.000000e-01 : f32
    %191 = vector.broadcast %cst_92 : f32 to vector<32x10xf32>
    %192 = arith.subf %190, %191 : vector<32x10xf32>
    %193 = vector.shape_cast %192 : vector<32x10xf32> to vector<1x32x10xf32>
    %cst_93 = arith.constant dense<0.000000e+00> : vector<1xf32>
    %194 = vector.multi_reduction <add>, %193, %cst_93 [1, 2] : vector<1x32x10xf32> to vector<1xf32>
    %195 = vector.shape_cast %194 : vector<1xf32> to vector<1x1x1xf32>
    %196 = vector.extract %195[0, 0, 0] : f32 from vector<1x1x1xf32>
    %cst_94 = arith.constant 9.99999993E-9 : f32
    %197 = vector.broadcast %cst_94 : f32 to vector<1x10xf32>
    %198 = arith.addf %172, %197 : vector<1x10xf32>
    %199 = math.log %198 : vector<1x10xf32>
    %cst_95 = arith.constant -2.30258489 : f32
    %200 = vector.broadcast %cst_95 : f32 to vector<1x10xf32>
    %201 = arith.subf %200, %199 : vector<1x10xf32>
    %202 = arith.mulf %198, %198 : vector<1x10xf32>
    %203 = arith.mulf %152, %152 : vector<1x10xf32>
    %204 = arith.addf %202, %203 : vector<1x10xf32>
    %cst_96 = arith.constant 49.9999886 : f32
    %205 = vector.broadcast %cst_96 : f32 to vector<1x10xf32>
    %206 = arith.mulf %204, %205 : vector<1x10xf32>
    %207 = arith.addf %201, %206 : vector<1x10xf32>
    %cst_97 = arith.constant 5.000000e-01 : f32
    %208 = vector.broadcast %cst_97 : f32 to vector<1x10xf32>
    %209 = arith.subf %207, %208 : vector<1x10xf32>
    %210 = vector.shape_cast %209 : vector<1x10xf32> to vector<1x1x10xf32>
    %cst_98 = arith.constant dense<0.000000e+00> : vector<1xf32>
    %211 = vector.multi_reduction <add>, %210, %cst_98 [1, 2] : vector<1x1x10xf32> to vector<1xf32>
    %212 = vector.shape_cast %211 : vector<1xf32> to vector<1x1x1xf32>
    %213 = vector.extract %212[0, 0, 0] : f32 from vector<1x1x1xf32>
    %214 = arith.addf %196, %213 : f32
    %c0_99 = arith.constant 0 : index
    %c0_100 = arith.constant 0 : index
    %215 = vector.load %arg7[%c0_99, %c0_100] : memref<8x10xf32, #tpu.memory_space<vmem>>, vector<8x10xf32>
    tpu.vector_store %arg7[%c0_99, %c0_100], %179 {strides = array<i32>} : memref<8x10xf32, #tpu.memory_space<vmem>>, vector<8x10xf32>,
    %216 = arith.addf %70, %142 : f32
    %217 = arith.addf %216, %214 : f32
    %218 = vector.broadcast %217 : f32 to vector<1x1xf32>
    %c0_101 = arith.constant 0 : index
    %c0_102 = arith.constant 0 : index
    %219 = vector.load %arg8[%c0_101, %c0_102] : memref<1x1xf32, #tpu.memory_space<vmem>>, vector<1x1xf32>
    tpu.vector_store %arg8[%c0_101, %c0_102], %218 {strides = array<i32>} : memref<1x1xf32, #tpu.memory_space<vmem>>, vector<1x1xf32>,
    return
  }
}

</mosaic_0001>

<llo_original>
// kernel: bayesian_mlp_forward.1
$region0: #{bayesian_mlp_forward.1}
  #allocation0 [shape = 'u32[]', space=smem, size = 0x4, offset = 0x4, fixed_abs, tag = 'smem constant byte address 0x4 - core index']
  #allocation1 [shape = 'u32[144,128]{1,0:T(1,128)}', space=vmem, size = 0x12000, scoped, tag = 'internal scratch']
  %s0 = inlined_call_operand.vmem [shape: f32[8,64], index: 0, kind: input, shape index: {}]
  %s1 = inlined_call_operand.vmem [shape: f32[3,64,32], index: 1, kind: input, shape index: {}]
  %s2 = inlined_call_operand.vmem [shape: f32[3,1,32], index: 2, kind: input, shape index: {}]
  %s3 = inlined_call_operand.vmem [shape: f32[3,32,32], index: 3, kind: input, shape index: {}]
  %s4 = inlined_call_operand.vmem [shape: f32[3,1,32], index: 4, kind: input, shape index: {}]
  %s5 = inlined_call_operand.vmem [shape: f32[3,32,10], index: 5, kind: input, shape index: {}]
  %s6 = inlined_call_operand.vmem [shape: f32[3,1,10], index: 6, kind: input, shape index: {}]
  %s7 = inlined_call_operand.hbm [shape: f32[8,10], index: 7, kind: output, shape index: {0}]
  %s8 = inlined_call_operand.hbm [shape: f32[1,1], index: 8, kind: output, shape index: {1}]
  %9 = xla_tuple %s7, %s8
  %s10 = sld [smem:[#allocation0]]
  $region46: #{bayesian_mlp_forward.1} parent=0
    _
  %s12 = ssub.s32 1, %s10
  %s13 = scalar_select 0, %s12, %s10
  $region1: #{bayesian_mlp_forward.1} parent=0
    #allocation2 [shape = 'u8[4096]{0}', space=vmem, size = 0x1000, scoped, tag = 'output window, operand 0, single buffered']
    #allocation3 [shape = 's32[1]{0}', space=sflag, size = 0x4, scoped, tag = 'scoped memory for bayesian_mlp_forward.1']
    #allocation4 [shape = 'u8[512]{0}', space=vmem, size = 0x400, scoped, tag = 'output window, operand 1, single buffered']
    #allocation5 [shape = 's32[1]{0}', space=sflag, size = 0x4, scoped, tag = 'scoped memory for bayesian_mlp_forward.1']
    %14 = vsyncpa [#allocation3], 0
    %15 = vsyncpa [#allocation5], 0
    // Predicated region
    $region2: #{bayesian_mlp_forward.1} parent=1 // pred_check
      _
    $region3: #{bayesian_mlp_forward.1} parent=1 // pred_check_branch
      %17 = sbr.rel (0) target = $region5
    $region4: #{bayesian_mlp_forward.1} parent=1 // pred_region
      _
    $region5: #{bayesian_mlp_forward.1} parent=1 // pred_fallthru
      _
    // Predicated region
    $region6: #{bayesian_mlp_forward.1} parent=1 // pred_check
      _
    $region7: #{bayesian_mlp_forward.1} parent=1 // pred_check_branch
      %19 = sbr.rel (0) target = $region9
    $region8: #{bayesian_mlp_forward.1} parent=1 // pred_region
      _
    $region9: #{bayesian_mlp_forward.1} parent=1 // pred_fallthru
      _
    // Predicated region
    $region10: #{bayesian_mlp_forward.1} parent=1 // pred_check
      _
    $region11: #{bayesian_mlp_forward.1} parent=1 // pred_check_branch
      %21 = sbr.rel (0) target = $region13
    $region12: #{bayesian_mlp_forward.1} parent=1 // pred_region
      _
    $region13: #{bayesian_mlp_forward.1} parent=1 // pred_fallthru
      _
    // Predicated region
    $region14: #{bayesian_mlp_forward.1} parent=1 // pred_check
      _
    $region15: #{bayesian_mlp_forward.1} parent=1 // pred_check_branch
      %23 = sbr.rel (0) target = $region17
    $region16: #{bayesian_mlp_forward.1} parent=1 // pred_region
      _
    $region17: #{bayesian_mlp_forward.1} parent=1 // pred_fallthru
      _
    // Predicated region
    $region18: #{bayesian_mlp_forward.1} parent=1 // pred_check
      _
    $region19: #{bayesian_mlp_forward.1} parent=1 // pred_check_branch
      %25 = sbr.rel (0) target = $region21
    $region20: #{bayesian_mlp_forward.1} parent=1 // pred_region
      _
    $region21: #{bayesian_mlp_forward.1} parent=1 // pred_fallthru
      _
    // Predicated region
    $region22: #{bayesian_mlp_forward.1} parent=1 // pred_check
      _
    $region23: #{bayesian_mlp_forward.1} parent=1 // pred_check_branch
      %27 = sbr.rel (0) target = $region25
    $region24: #{bayesian_mlp_forward.1} parent=1 // pred_region
      _
    $region25: #{bayesian_mlp_forward.1} parent=1 // pred_fallthru
      _
    // Predicated region
    $region26: #{bayesian_mlp_forward.1} parent=1 // pred_check
      _
    $region27: #{bayesian_mlp_forward.1} parent=1 // pred_check_branch
      %29 = sbr.rel (0) target = $region29
    $region28: #{bayesian_mlp_forward.1} parent=1 // pred_region
      _
    $region29: #{bayesian_mlp_forward.1} parent=1 // pred_fallthru
      _
    %v30 = vld [vmem:[%s0] sm:$0xff]
    %v31 = vld [vmem:[%s1] sm:$0xff]
    %v32 = vld [vmem:[%s1 + $0x8] sm:$0xff]
    %v33 = vld [vmem:[%s1 + $0x10] sm:$0xff]
    %v34 = vld [vmem:[%s1 + $0x18] sm:$0xff]
    %v35 = vld [vmem:[%s1 + $0x20] sm:$0xff]
    %v36 = vld [vmem:[%s1 + $0x28] sm:$0xff]
    %v37 = vld [vmem:[%s1 + $0x30] sm:$0xff]
    %v38 = vld [vmem:[%s1 + $0x38] sm:$0xff]
    %s39 = scalar_lea.vmem %s1, 64
    %v40 = vld [vmem:[%s39] sm:$0xff]
    %v41 = vld [vmem:[%s39 + $0x8] sm:$0xff]
    %v42 = vld [vmem:[%s39 + $0x10] sm:$0xff]
    %v43 = vld [vmem:[%s39 + $0x18] sm:$0xff]
    %v44 = vld [vmem:[%s39 + $0x20] sm:$0xff]
    %v45 = vld [vmem:[%s39 + $0x28] sm:$0xff]
    %v46 = vld [vmem:[%s39 + $0x30] sm:$0xff]
    %v47 = vld [vmem:[%s39 + $0x38] sm:$0xff]
    %s48 = scalar_lea.vmem %s1, 128
    %v49 = vld [vmem:[%s48] sm:$0xff]
    %v50 = vld [vmem:[%s48 + $0x8] sm:$0xff]
    %v51 = vld [vmem:[%s48 + $0x10] sm:$0xff]
    %v52 = vld [vmem:[%s48 + $0x18] sm:$0xff]
    %v53 = vld [vmem:[%s48 + $0x20] sm:$0xff]
    %v54 = vld [vmem:[%s48 + $0x28] sm:$0xff]
    %v55 = vld [vmem:[%s48 + $0x30] sm:$0xff]
    %v56 = vld [vmem:[%s48 + $0x38] sm:$0xff]
    %v57 = vld [vmem:[%s2] sm:$0x1]
    %s58 = scalar_lea.vmem %s2, 1
    %v59 = vld [vmem:[%s58] sm:$0x1]
    %s60 = scalar_lea.vmem %s2, 2
    %v61 = vld [vmem:[%s60] sm:$0x1]
    %v62 = vmax.f32 %v40, 0.0
    %v63 = vmax.f32 %v41, 0.0
    %v64 = vmax.f32 %v42, 0.0
    %v65 = vmax.f32 %v43, 0.0
    %v66 = vmax.f32 %v44, 0.0
    %v67 = vmax.f32 %v45, 0.0
    %v68 = vmax.f32 %v46, 0.0
    %v69 = vmax.f32 %v47, 0.0
    %v70 = vand.u32 2147483647, %v40
    %v71 = vand.u32 2147483647, %v41
    %v72 = vand.u32 2147483647, %v42
    %v73 = vand.u32 2147483647, %v43
    %v74 = vand.u32 2147483647, %v44
    %v75 = vand.u32 2147483647, %v45
    %v76 = vand.u32 2147483647, %v46
    %v77 = vand.u32 2147483647, %v47
    %v78 = vsub.f32 0.0, %v70
    %v79 = vsub.f32 0.0, %v71
    %v80 = vsub.f32 0.0, %v72
    %v81 = vsub.f32 0.0, %v73
    %v82 = vsub.f32 0.0, %v74
    %v83 = vsub.f32 0.0, %v75
    %v84 = vsub.f32 0.0, %v76
    %v85 = vsub.f32 0.0, %v77
    %v86 = vmul.f32 %v78, 1.442695
    %v87 = vpow.pop %v86
    %v88 = vmul.f32 %v79, 1.442695
    %v89 = vpow.pop %v88
    %v90 = vmul.f32 %v80, 1.442695
    %v91 = vpow.pop %v90
    %v92 = vmul.f32 %v81, 1.442695
    %v93 = vpow.pop %v92
    %v94 = vmul.f32 %v82, 1.442695
    %v95 = vpow.pop %v94
    %v96 = vmul.f32 %v83, 1.442695
    %v97 = vpow.pop %v96
    %v98 = vmul.f32 %v84, 1.442695
    %v99 = vpow.pop %v98
    %v100 = vmul.f32 %v85, 1.442695
    %v101 = vpow.pop %v100
    %v102 = vadd.f32 %v87, 1.0
    %v103 = vlog2.pop %v102
    %v104 = vmul.f32 %v103, 0.6931472
    %v105 = vmul.f32 -0.5, %v87
    %v106 = vadd.f32 %v105, 1.0
    %v107 = vmul.f32 %v106, %v87
    %v108 = vand.u32 2147483647, %v87
    %vm109 = vcmp.lt.f32.partialorder %v108, 0.0004427343
    %v110 = vsel %vm109, %v107, %v104
    %v111 = vadd.f32 %v89, 1.0
    %v112 = vlog2.pop %v111
    %v113 = vmul.f32 %v112, 0.6931472
    %v114 = vmul.f32 -0.5, %v89
    %v115 = vadd.f32 %v114, 1.0
    %v116 = vmul.f32 %v115, %v89
    %v117 = vand.u32 2147483647, %v89
    %vm118 = vcmp.lt.f32.partialorder %v117, 0.0004427343
    %v119 = vsel %vm118, %v116, %v113
    %v120 = vadd.f32 %v91, 1.0
    %v121 = vlog2.pop %v120
    %v122 = vmul.f32 %v121, 0.6931472
    %v123 = vmul.f32 -0.5, %v91
    %v124 = vadd.f32 %v123, 1.0
    %v125 = vmul.f32 %v124, %v91
    %v126 = vand.u32 2147483647, %v91
    %vm127 = vcmp.lt.f32.partialorder %v126, 0.0004427343
    %v128 = vsel %vm127, %v125, %v122
    %v129 = vadd.f32 %v93, 1.0
    %v130 = vlog2.pop %v129
    %v131 = vmul.f32 %v130, 0.6931472
    %v132 = vmul.f32 -0.5, %v93
    %v133 = vadd.f32 %v132, 1.0
    %v134 = vmul.f32 %v133, %v93
    %v135 = vand.u32 2147483647, %v93
    %vm136 = vcmp.lt.f32.partialorder %v135, 0.0004427343
    %v137 = vsel %vm136, %v134, %v131
    %v138 = vadd.f32 %v95, 1.0
    %v139 = vlog2.pop %v138
    %v140 = vmul.f32 %v139, 0.6931472
    %v141 = vmul.f32 -0.5, %v95
    %v142 = vadd.f32 %v141, 1.0
    %v143 = vmul.f32 %v142, %v95
    %v144 = vand.u32 2147483647, %v95
    %vm145 = vcmp.lt.f32.partialorder %v144, 0.0004427343
    %v146 = vsel %vm145, %v143, %v140
    %v147 = vadd.f32 %v97, 1.0
    %v148 = vlog2.pop %v147
    %v149 = vmul.f32 %v148, 0.6931472
    %v150 = vmul.f32 -0.5, %v97
    %v151 = vadd.f32 %v150, 1.0
    %v152 = vmul.f32 %v151, %v97
    %v153 = vand.u32 2147483647, %v97
    %vm154 = vcmp.lt.f32.partialorder %v153, 0.0004427343
    %v155 = vsel %vm154, %v152, %v149
    %v156 = vadd.f32 %v99, 1.0
    %v157 = vlog2.pop %v156
    %v158 = vmul.f32 %v157, 0.6931472
    %v159 = vmul.f32 -0.5, %v99
    %v160 = vadd.f32 %v159, 1.0
    %v161 = vmul.f32 %v160, %v99
    %v162 = vand.u32 2147483647, %v99
    %vm163 = vcmp.lt.f32.partialorder %v162, 0.0004427343
    %v164 = vsel %vm163, %v161, %v158
    %v165 = vadd.f32 %v101, 1.0
    %v166 = vlog2.pop %v165
    %v167 = vmul.f32 %v166, 0.6931472
    %v168 = vmul.f32 -0.5, %v101
    %v169 = vadd.f32 %v168, 1.0
    %v170 = vmul.f32 %v169, %v101
    %v171 = vand.u32 2147483647, %v101
    %vm172 = vcmp.lt.f32.partialorder %v171, 0.0004427343
    %v173 = vsel %vm172, %v170, %v167
    %v174 = vadd.f32 %v62, %v110
    %v175 = vadd.f32 %v63, %v119
    %v176 = vadd.f32 %v64, %v128
    %v177 = vadd.f32 %v65, %v137
    %v178 = vadd.f32 %v66, %v146
    %v179 = vadd.f32 %v67, %v155
    %v180 = vadd.f32 %v68, %v164
    %v181 = vadd.f32 %v69, %v173
    %v182 = vmax.f32 %v59, 0.0
    %v183 = vand.u32 2147483647, %v59
    %v184 = vsub.f32 0.0, %v183
    %v185 = vmul.f32 %v184, 1.442695
    %v186 = vpow.pop %v185
    %v187 = vadd.f32 %v186, 1.0
    %v188 = vlog2.pop %v187
    %v189 = vmul.f32 %v188, 0.6931472
    %v190 = vmul.f32 -0.5, %v186
    %v191 = vadd.f32 %v190, 1.0
    %v192 = vmul.f32 %v191, %v186
    %v193 = vand.u32 2147483647, %v186
    %vm194 = vcmp.lt.f32.partialorder %v193, 0.0004427343
    %v195 = vsel %vm194, %v192, %v189
    %v196 = vadd.f32 %v182, %v195
    %v197 = vmul.f32 %v174, %v49
    %v198 = vmul.f32 %v175, %v50
    %v199 = vmul.f32 %v176, %v51
    %v200 = vmul.f32 %v177, %v52
    %v201 = vmul.f32 %v178, %v53
    %v202 = vmul.f32 %v179, %v54
    %v203 = vmul.f32 %v180, %v55
    %v204 = vmul.f32 %v181, %v56
    %v205 = vadd.f32 %v31, %v197
    %v206 = vadd.f32 %v32, %v198
    %v207 = vadd.f32 %v33, %v199
    %v208 = vadd.f32 %v34, %v200
    %v209 = vadd.f32 %v35, %v201
    %v210 = vadd.f32 %v36, %v202
    %v211 = vadd.f32 %v37, %v203
    %v212 = vadd.f32 %v38, %v204
    %v213 = vmul.f32 %v196, %v61
    %v214 = vadd.f32 %v57, %v213
    %v216 = vlaneseq
    %v217 = vshrl.u32 %v216, 7
    %v218 = vsub.s32 0, %v217
    %v219 = vrot.slane %v214, %v218
    %vm221 = vcmask 523264
    %v223 = vsel %vm221, %v30, 0
    %225 = vmatprep.subr.mxu0 0.0
    %226 = vmatpush1.msra.mxu0 0.0
    %227 = vmatprep.subr.mxu0 0.0
    %228 = vmatpush1.msra.mxu0 0.0
    %229 = vmatprep.subr.mxu0 0.0
    %230 = vmatpush1.msra.mxu0 0.0
    %231 = vmatprep.subr.mxu0 0.0
    %232 = vmatpush1.msra.mxu0 0.0
    %233 = vmatprep.subr.mxu0 0.0
    %234 = vmatpush1.msra.mxu0 0.0
    %235 = vmatprep.subr.mxu0 0.0
    %236 = vmatpush1.msra.mxu0 0.0
    %237 = vmatprep.subr.mxu0 0.0
    %238 = vmatpush1.msra.mxu0 0.0
    %239 = vmatprep.subr.mxu0 0.0
    %240 = vmatpush1.msra.mxu0 0.0
    %241 = vmatprep.subr.mxu0 0.0
    %242 = vmatpush1.msra.mxu0 %v212
    %243 = vmatprep.subr.mxu0 0.0
    %244 = vmatpush1.msra.mxu0 %v211
    %245 = vmatprep.subr.mxu0 0.0
    %246 = vmatpush1.msra.mxu0 %v210
    %247 = vmatprep.subr.mxu0 0.0
    %248 = vmatpush1.msra.mxu0 %v209
    %249 = vmatprep.subr.mxu0 0.0
    %250 = vmatpush1.msra.mxu0 %v208
    %251 = vmatprep.subr.mxu0 0.0
    %252 = vmatpush1.msra.mxu0 %v207
    %253 = vmatprep.subr.mxu0 0.0
    %254 = vmatpush1.msra.mxu0 %v206
    %255 = vmatprep.subr.mxu0 0.0
    %256 = vmatpush1.msra.mxu0 %v205
    %257 = vmatprep.subr.mxu0 0.0
    %258 = vmatpush2.msra.mxu0 0.0
    %259 = vmatprep.subr.mxu0 0.0
    %260 = vmatpush2.msra.mxu0 0.0
    %261 = vmatprep.subr.mxu0 0.0
    %262 = vmatpush2.msra.mxu0 0.0
    %263 = vmatprep.subr.mxu0 0.0
    %264 = vmatpush2.msra.mxu0 0.0
    %265 = vmatprep.subr.mxu0 0.0
    %266 = vmatpush2.msra.mxu0 0.0
    %267 = vmatprep.subr.mxu0 0.0
    %268 = vmatpush2.msra.mxu0 0.0
    %269 = vmatprep.subr.mxu0 0.0
    %270 = vmatpush2.msra.mxu0 0.0
    %271 = vmatprep.subr.mxu0 0.0
    %272 = vmatpush2.msra.mxu0 0.0
    %273 = vmatprep.subr.mxu0 0.0
    %274 = vmatpush2.msra.mxu0 0.0
    %275 = vmatprep.subr.mxu0 0.0
    %276 = vmatpush2.msra.mxu0 0.0
    %277 = vmatprep.subr.mxu0 0.0
    %278 = vmatpush2.msra.mxu0 0.0
    %279 = vmatprep.subr.mxu0 0.0
    %280 = vmatpush2.msra.mxu0 0.0
    %281 = vmatprep.subr.mxu0 0.0
    %282 = vmatpush2.msra.mxu0 0.0
    %283 = vmatprep.subr.mxu0 0.0
    %284 = vmatpush2.msra.mxu0 0.0
    %285 = vmatprep.subr.mxu0 0.0
    %286 = vmatpush2.msra.mxu0 0.0
    %287 = vmatprep.subr.mxu0 0.0
    %288 = vmatpush2.msra.mxu0 0.0
    %289 = vmatprep.mubr.f32.mxu0 0.0
    %290 = vmatmul.mubr.f32.gmra.mxu0 %v223
    %v291 = vpop.f32.mrf.mxu0
    %v292 = vadd.f32 %v219, %v291
    %v293 = vpop.f32.mrf.mxu0
    %294 = vdwg.mxu0
    %v295 = vadd.f32 %v174, 1e-08
    %v296 = vadd.f32 %v175, 1e-08
    %v297 = vadd.f32 %v176, 1e-08
    %v298 = vadd.f32 %v177, 1e-08
    %v299 = vadd.f32 %v178, 1e-08
    %v300 = vadd.f32 %v179, 1e-08
    %v301 = vadd.f32 %v180, 1e-08
    %v302 = vadd.f32 %v181, 1e-08
    %v303 = vlog2.pop %v295
    %v304 = vmul.f32 %v303, 0.6931472
    %v305 = vlog2.pop %v296
    %v306 = vmul.f32 %v305, 0.6931472
    %v307 = vlog2.pop %v297
    %v308 = vmul.f32 %v307, 0.6931472
    %v309 = vlog2.pop %v298
    %v310 = vmul.f32 %v309, 0.6931472
    %v311 = vlog2.pop %v299
    %v312 = vmul.f32 %v311, 0.6931472
    %v313 = vlog2.pop %v300
    %v314 = vmul.f32 %v313, 0.6931472
    %v315 = vlog2.pop %v301
    %v316 = vmul.f32 %v315, 0.6931472
    %v317 = vlog2.pop %v302
    %v318 = vmul.f32 %v317, 0.6931472
    %v319 = vsub.f32 -2.302585, %v304
    %v320 = vsub.f32 -2.302585, %v306
    %v321 = vsub.f32 -2.302585, %v308
    %v322 = vsub.f32 -2.302585, %v310
    %v323 = vsub.f32 -2.302585, %v312
    %v324 = vsub.f32 -2.302585, %v314
    %v325 = vsub.f32 -2.302585, %v316
    %v326 = vsub.f32 -2.302585, %v318
    %v327 = vmul.f32 %v295, %v295
    %v328 = vmul.f32 %v296, %v296
    %v329 = vmul.f32 %v297, %v297
    %v330 = vmul.f32 %v298, %v298
    %v331 = vmul.f32 %v299, %v299
    %v332 = vmul.f32 %v300, %v300
    %v333 = vmul.f32 %v301, %v301
    %v334 = vmul.f32 %v302, %v302
    %v335 = vmul.f32 %v31, %v31
    %v336 = vmul.f32 %v32, %v32
    %v337 = vmul.f32 %v33, %v33
    %v338 = vmul.f32 %v34, %v34
    %v339 = vmul.f32 %v35, %v35
    %v340 = vmul.f32 %v36, %v36
    %v341 = vmul.f32 %v37, %v37
    %v342 = vmul.f32 %v38, %v38
    %v343 = vadd.f32 %v327, %v335
    %v344 = vadd.f32 %v328, %v336
    %v345 = vadd.f32 %v329, %v337
    %v346 = vadd.f32 %v330, %v338
    %v347 = vadd.f32 %v331, %v339
    %v348 = vadd.f32 %v332, %v340
    %v349 = vadd.f32 %v333, %v341
    %v350 = vadd.f32 %v334, %v342
    %v351 = vmul.f32 %v343, 49.99999
    %v352 = vmul.f32 %v344, 49.99999
    %v353 = vmul.f32 %v345, 49.99999
    %v354 = vmul.f32 %v346, 49.99999
    %v355 = vmul.f32 %v347, 49.99999
    %v356 = vmul.f32 %v348, 49.99999
    %v357 = vmul.f32 %v349, 49.99999
    %v358 = vmul.f32 %v350, 49.99999
    %v359 = vadd.f32 %v319, %v351
    %v360 = vadd.f32 %v320, %v352
    %v361 = vadd.f32 %v321, %v353
    %v362 = vadd.f32 %v322, %v354
    %v363 = vadd.f32 %v323, %v355
    %v364 = vadd.f32 %v324, %v356
    %v365 = vadd.f32 %v325, %v357
    %v366 = vadd.f32 %v326, %v358
    %v367 = vsub.f32 %v359, 0.5
    %v368 = vsub.f32 %v360, 0.5
    %v369 = vsub.f32 %v361, 0.5
    %v370 = vsub.f32 %v362, 0.5
    %v371 = vsub.f32 %v363, 0.5
    %v372 = vsub.f32 %v364, 0.5
    %v373 = vsub.f32 %v365, 0.5
    %v374 = vsub.f32 %v366, 0.5
    %vm375 = vcmask 261120
    %v376 = vsel %vm375, %v367, 0.0
    %v377 = vsel %vm375, %v368, 0.0
    %v378 = vadd.f32 %v376, %v377
    %v379 = vsel %vm375, %v369, 0.0
    %v380 = vadd.f32 %v378, %v379
    %v381 = vsel %vm375, %v370, 0.0
    %v382 = vadd.f32 %v380, %v381
    %v383 = vsel %vm375, %v371, 0.0
    %v384 = vadd.f32 %v382, %v383
    %v385 = vsel %vm375, %v372, 0.0
    %v386 = vadd.f32 %v384, %v385
    %v387 = vsel %vm375, %v373, 0.0
    %v388 = vadd.f32 %v386, %v387
    %v389 = vsel %vm375, %v374, 0.0
    %v390 = vadd.f32 %v388, %v389
    %391 = vadd.xlane.f32.xlu0 %v390
    %v392 = vpop.xlane.xlu0 %391
    %v393 = vrot.slane %v392, 4
    %v394 = vadd.f32 %v392, %v393
    %v395 = vrot.slane %v394, 2
    %v396 = vadd.f32 %v394, %v395
    %v397 = vrot.slane %v396, 1
    %v398 = vadd.f32 %v396, %v397
    %s399 = vtos %v398
    %v400 = vadd.f32 %v196, 1e-08
    %v401 = vlog2.pop %v400
    %v402 = vmul.f32 %v401, 0.6931472
    %v403 = vsub.f32 -2.302585, %v402
    %v404 = vmul.f32 %v400, %v400
    %v405 = vmul.f32 %v57, %v57
    %v406 = vadd.f32 %v404, %v405
    %v407 = vmul.f32 %v406, 49.99999
    %v408 = vadd.f32 %v403, %v407
    %v409 = vsub.f32 %v408, 0.5
    %vm410 = vcmask 253952
    %v411 = vsel %vm410, %v409, 0.0
    %412 = vadd.xlane.f32.xlu0 %v411
    %v413 = vpop.xlane.xlu0 %412
    %v414 = vrot.slane %v413, 4
    %v415 = vadd.f32 %v413, %v414
    %v416 = vrot.slane %v415, 2
    %v417 = vadd.f32 %v415, %v416
    %v418 = vrot.slane %v417, 1
    %v419 = vadd.f32 %v417, %v418
    %s420 = vtos %v419
    %s421 = sadd.f32 %s399, %s420
    %v422 = vmax.f32 %v292, 0.0
    %v423 = vld [vmem:[%s3] sm:$0xff]
    %v424 = vld [vmem:[%s3 + $0x8] sm:$0xff]
    %v425 = vld [vmem:[%s3 + $0x10] sm:$0xff]
    %v426 = vld [vmem:[%s3 + $0x18] sm:$0xff]
    %s427 = scalar_lea.vmem %s3, 32
    %v428 = vld [vmem:[%s427] sm:$0xff]
    %v429 = vld [vmem:[%s427 + $0x8] sm:$0xff]
    %v430 = vld [vmem:[%s427 + $0x10] sm:$0xff]
    %v431 = vld [vmem:[%s427 + $0x18] sm:$0xff]
    %s432 = scalar_lea.vmem %s3, 64
    %v433 = vld [vmem:[%s432] sm:$0xff]
    %v434 = vld [vmem:[%s432 + $0x8] sm:$0xff]
    %v435 = vld [vmem:[%s432 + $0x10] sm:$0xff]
    %v436 = vld [vmem:[%s432 + $0x18] sm:$0xff]
    %v437 = vld [vmem:[%s4] sm:$0x1]
    %s438 = scalar_lea.vmem %s4, 1
    %v439 = vld [vmem:[%s438] sm:$0x1]
    %s440 = scalar_lea.vmem %s4, 2
    %v441 = vld [vmem:[%s440] sm:$0x1]
    %v442 = vmax.f32 %v428, 0.0
    %v443 = vmax.f32 %v429, 0.0
    %v444 = vmax.f32 %v430, 0.0
    %v445 = vmax.f32 %v431, 0.0
    %v446 = vand.u32 2147483647, %v428
    %v447 = vand.u32 2147483647, %v429
    %v448 = vand.u32 2147483647, %v430
    %v449 = vand.u32 2147483647, %v431
    %v450 = vsub.f32 0.0, %v446
    %v451 = vsub.f32 0.0, %v447
    %v452 = vsub.f32 0.0, %v448
    %v453 = vsub.f32 0.0, %v449
    %v454 = vmul.f32 %v450, 1.442695
    %v455 = vpow.pop %v454
    %v456 = vmul.f32 %v451, 1.442695
    %v457 = vpow.pop %v456
    %v458 = vmul.f32 %v452, 1.442695
    %v459 = vpow.pop %v458
    %v460 = vmul.f32 %v453, 1.442695
    %v461 = vpow.pop %v460
    %v462 = vadd.f32 %v455, 1.0
    %v463 = vlog2.pop %v462
    %v464 = vmul.f32 %v463, 0.6931472
    %v465 = vmul.f32 -0.5, %v455
    %v466 = vadd.f32 %v465, 1.0
    %v467 = vmul.f32 %v466, %v455
    %v468 = vand.u32 2147483647, %v455
    %vm469 = vcmp.lt.f32.partialorder %v468, 0.0004427343
    %v470 = vsel %vm469, %v467, %v464
    %v471 = vadd.f32 %v457, 1.0
    %v472 = vlog2.pop %v471
    %v473 = vmul.f32 %v472, 0.6931472
    %v474 = vmul.f32 -0.5, %v457
    %v475 = vadd.f32 %v474, 1.0
    %v476 = vmul.f32 %v475, %v457
    %v477 = vand.u32 2147483647, %v457
    %vm478 = vcmp.lt.f32.partialorder %v477, 0.0004427343
    %v479 = vsel %vm478, %v476, %v473
    %v480 = vadd.f32 %v459, 1.0
    %v481 = vlog2.pop %v480
    %v482 = vmul.f32 %v481, 0.6931472
    %v483 = vmul.f32 -0.5, %v459
    %v484 = vadd.f32 %v483, 1.0
    %v485 = vmul.f32 %v484, %v459
    %v486 = vand.u32 2147483647, %v459
    %vm487 = vcmp.lt.f32.partialorder %v486, 0.0004427343
    %v488 = vsel %vm487, %v485, %v482
    %v489 = vadd.f32 %v461, 1.0
    %v490 = vlog2.pop %v489
    %v491 = vmul.f32 %v490, 0.6931472
    %v492 = vmul.f32 -0.5, %v461
    %v493 = vadd.f32 %v492, 1.0
    %v494 = vmul.f32 %v493, %v461
    %v495 = vand.u32 2147483647, %v461
    %vm496 = vcmp.lt.f32.partialorder %v495, 0.0004427343
    %v497 = vsel %vm496, %v494, %v491
    %v498 = vadd.f32 %v442, %v470
    %v499 = vadd.f32 %v443, %v479
    %v500 = vadd.f32 %v444, %v488
    %v501 = vadd.f32 %v445, %v497
    %v502 = vmax.f32 %v439, 0.0
    %v503 = vand.u32 2147483647, %v439
    %v504 = vsub.f32 0.0, %v503
    %v505 = vmul.f32 %v504, 1.442695
    %v506 = vpow.pop %v505
    %v507 = vadd.f32 %v506, 1.0
    %v508 = vlog2.pop %v507
    %v509 = vmul.f32 %v508, 0.6931472
    %v510 = vmul.f32 -0.5, %v506
    %v511 = vadd.f32 %v510, 1.0
    %v512 = vmul.f32 %v511, %v506
    %v513 = vand.u32 2147483647, %v506
    %vm514 = vcmp.lt.f32.partialorder %v513, 0.0004427343
    %v515 = vsel %vm514, %v512, %v509
    %v516 = vadd.f32 %v502, %v515
    %v517 = vmul.f32 %v498, %v433
    %v518 = vmul.f32 %v499, %v434
    %v519 = vmul.f32 %v500, %v435
    %v520 = vmul.f32 %v501, %v436
    %v521 = vadd.f32 %v423, %v517
    %v522 = vadd.f32 %v424, %v518
    %v523 = vadd.f32 %v425, %v519
    %v524 = vadd.f32 %v426, %v520
    %v525 = vmul.f32 %v516, %v441
    %v526 = vadd.f32 %v437, %v525
    %v528 = vlaneseq
    %v529 = vshrl.u32 %v528, 7
    %v530 = vsub.s32 0, %v529
    %v531 = vrot.slane %v526, %v530
    %v534 = vsel %vm375, %v422, 0
    %536 = vmatprep.subr.mxu0 0.0
    %537 = vmatpush1.msra.mxu0 0.0
    %538 = vmatprep.subr.mxu0 0.0
    %539 = vmatpush1.msra.mxu0 0.0
    %540 = vmatprep.subr.mxu0 0.0
    %541 = vmatpush1.msra.mxu0 0.0
    %542 = vmatprep.subr.mxu0 0.0
    %543 = vmatpush1.msra.mxu0 0.0
    %544 = vmatprep.subr.mxu0 0.0
    %545 = vmatpush1.msra.mxu0 0.0
    %546 = vmatprep.subr.mxu0 0.0
    %547 = vmatpush1.msra.mxu0 0.0
    %548 = vmatprep.subr.mxu0 0.0
    %549 = vmatpush1.msra.mxu0 0.0
    %550 = vmatprep.subr.mxu0 0.0
    %551 = vmatpush1.msra.mxu0 0.0
    %552 = vmatprep.subr.mxu0 0.0
    %553 = vmatpush1.msra.mxu0 0.0
    %554 = vmatprep.subr.mxu0 0.0
    %555 = vmatpush1.msra.mxu0 0.0
    %556 = vmatprep.subr.mxu0 0.0
    %557 = vmatpush1.msra.mxu0 0.0
    %558 = vmatprep.subr.mxu0 0.0
    %559 = vmatpush1.msra.mxu0 0.0
    %560 = vmatprep.subr.mxu0 0.0
    %561 = vmatpush1.msra.mxu0 %v524
    %562 = vmatprep.subr.mxu0 0.0
    %563 = vmatpush1.msra.mxu0 %v523
    %564 = vmatprep.subr.mxu0 0.0
    %565 = vmatpush1.msra.mxu0 %v522
    %566 = vmatprep.subr.mxu0 0.0
    %567 = vmatpush1.msra.mxu0 %v521
    %568 = vmatprep.subr.mxu0 0.0
    %569 = vmatpush2.msra.mxu0 0.0
    %570 = vmatprep.subr.mxu0 0.0
    %571 = vmatpush2.msra.mxu0 0.0
    %572 = vmatprep.subr.mxu0 0.0
    %573 = vmatpush2.msra.mxu0 0.0
    %574 = vmatprep.subr.mxu0 0.0
    %575 = vmatpush2.msra.mxu0 0.0
    %576 = vmatprep.subr.mxu0 0.0
    %577 = vmatpush2.msra.mxu0 0.0
    %578 = vmatprep.subr.mxu0 0.0
    %579 = vmatpush2.msra.mxu0 0.0
    %580 = vmatprep.subr.mxu0 0.0
    %581 = vmatpush2.msra.mxu0 0.0
    %582 = vmatprep.subr.mxu0 0.0
    %583 = vmatpush2.msra.mxu0 0.0
    %584 = vmatprep.subr.mxu0 0.0
    %585 = vmatpush2.msra.mxu0 0.0
    %586 = vmatprep.subr.mxu0 0.0
    %587 = vmatpush2.msra.mxu0 0.0
    %588 = vmatprep.subr.mxu0 0.0
    %589 = vmatpush2.msra.mxu0 0.0
    %590 = vmatprep.subr.mxu0 0.0
    %591 = vmatpush2.msra.mxu0 0.0
    %592 = vmatprep.subr.mxu0 0.0
    %593 = vmatpush2.msra.mxu0 0.0
    %594 = vmatprep.subr.mxu0 0.0
    %595 = vmatpush2.msra.mxu0 0.0
    %596 = vmatprep.subr.mxu0 0.0
    %597 = vmatpush2.msra.mxu0 0.0
    %598 = vmatprep.subr.mxu0 0.0
    %599 = vmatpush2.msra.mxu0 0.0
    %600 = vmatprep.mubr.f32.mxu0 0.0
    %601 = vmatmul.mubr.f32.gmra.mxu0 %v534
    %v602 = vpop.f32.mrf.mxu0
    %v603 = vadd.f32 %v531, %v602
    %v604 = vpop.f32.mrf.mxu0
    %605 = vdwg.mxu0
    %v606 = vadd.f32 %v498, 1e-08
    %v607 = vadd.f32 %v499, 1e-08
    %v608 = vadd.f32 %v500, 1e-08
    %v609 = vadd.f32 %v501, 1e-08
    %v610 = vlog2.pop %v606
    %v611 = vmul.f32 %v610, 0.6931472
    %v612 = vlog2.pop %v607
    %v613 = vmul.f32 %v612, 0.6931472
    %v614 = vlog2.pop %v608
    %v615 = vmul.f32 %v614, 0.6931472
    %v616 = vlog2.pop %v609
    %v617 = vmul.f32 %v616, 0.6931472
    %v618 = vsub.f32 -2.302585, %v611
    %v619 = vsub.f32 -2.302585, %v613
    %v620 = vsub.f32 -2.302585, %v615
    %v621 = vsub.f32 -2.302585, %v617
    %v622 = vmul.f32 %v606, %v606
    %v623 = vmul.f32 %v607, %v607
    %v624 = vmul.f32 %v608, %v608
    %v625 = vmul.f32 %v609, %v609
    %v626 = vmul.f32 %v423, %v423
    %v627 = vmul.f32 %v424, %v424
    %v628 = vmul.f32 %v425, %v425
    %v629 = vmul.f32 %v426, %v426
    %v630 = vadd.f32 %v622, %v626
    %v631 = vadd.f32 %v623, %v627
    %v632 = vadd.f32 %v624, %v628
    %v633 = vadd.f32 %v625, %v629
    %v634 = vmul.f32 %v630, 49.99999
    %v635 = vmul.f32 %v631, 49.99999
    %v636 = vmul.f32 %v632, 49.99999
    %v637 = vmul.f32 %v633, 49.99999
    %v638 = vadd.f32 %v618, %v634
    %v639 = vadd.f32 %v619, %v635
    %v640 = vadd.f32 %v620, %v636
    %v641 = vadd.f32 %v621, %v637
    %v642 = vsub.f32 %v638, 0.5
    %v643 = vsub.f32 %v639, 0.5
    %v644 = vsub.f32 %v640, 0.5
    %v645 = vsub.f32 %v641, 0.5
    %v646 = vsel %vm375, %v642, 0.0
    %v647 = vsel %vm375, %v643, 0.0
    %v648 = vadd.f32 %v646, %v647
    %v649 = vsel %vm375, %v644, 0.0
    %v650 = vadd.f32 %v648, %v649
    %v651 = vsel %vm375, %v645, 0.0
    %v652 = vadd.f32 %v650, %v651
    %653 = vadd.xlane.f32.xlu0 %v652
    %v654 = vpop.xlane.xlu0 %653
    %v655 = vrot.slane %v654, 4
    %v656 = vadd.f32 %v654, %v655
    %v657 = vrot.slane %v656, 2
    %v658 = vadd.f32 %v656, %v657
    %v659 = vrot.slane %v658, 1
    %v660 = vadd.f32 %v658, %v659
    %s661 = vtos %v660
    %v662 = vadd.f32 %v516, 1e-08
    %v663 = vlog2.pop %v662
    %v664 = vmul.f32 %v663, 0.6931472
    %v665 = vsub.f32 -2.302585, %v664
    %v666 = vmul.f32 %v662, %v662
    %v667 = vmul.f32 %v437, %v437
    %v668 = vadd.f32 %v666, %v667
    %v669 = vmul.f32 %v668, 49.99999
    %v670 = vadd.f32 %v665, %v669
    %v671 = vsub.f32 %v670, 0.5
    %v672 = vsel %vm410, %v671, 0.0
    %673 = vadd.xlane.f32.xlu0 %v672
    %v674 = vpop.xlane.xlu0 %673
    %v675 = vrot.slane %v674, 4
    %v676 = vadd.f32 %v674, %v675
    %v677 = vrot.slane %v676, 2
    %v678 = vadd.f32 %v676, %v677
    %v679 = vrot.slane %v678, 1
    %v680 = vadd.f32 %v678, %v679
    %s681 = vtos %v680
    %s682 = sadd.f32 %s661, %s681
    %v683 = vmax.f32 %v603, 0.0
    %v684 = vld [vmem:[%s5] sm:$0xff]
    %v685 = vld [vmem:[%s5 + $0x8] sm:$0xff]
    %v686 = vld [vmem:[%s5 + $0x10] sm:$0xff]
    %v687 = vld [vmem:[%s5 + $0x18] sm:$0xff]
    %s688 = scalar_lea.vmem %s5, 32
    %v689 = vld [vmem:[%s688] sm:$0xff]
    %v690 = vld [vmem:[%s688 + $0x8] sm:$0xff]
    %v691 = vld [vmem:[%s688 + $0x10] sm:$0xff]
    %v692 = vld [vmem:[%s688 + $0x18] sm:$0xff]
    %s693 = scalar_lea.vmem %s5, 64
    %v694 = vld [vmem:[%s693] sm:$0xff]
    %v695 = vld [vmem:[%s693 + $0x8] sm:$0xff]
    %v696 = vld [vmem:[%s693 + $0x10] sm:$0xff]
    %v697 = vld [vmem:[%s693 + $0x18] sm:$0xff]
    %v698 = vld [vmem:[%s6] sm:$0x1]
    %s699 = scalar_lea.vmem %s6, 1
    %v700 = vld [vmem:[%s699] sm:$0x1]
    %s701 = scalar_lea.vmem %s6, 2
    %v702 = vld [vmem:[%s701] sm:$0x1]
    %v703 = vmax.f32 %v689, 0.0
    %v704 = vmax.f32 %v690, 0.0
    %v705 = vmax.f32 %v691, 0.0
    %v706 = vmax.f32 %v692, 0.0
    %v707 = vand.u32 2147483647, %v689
    %v708 = vand.u32 2147483647, %v690
    %v709 = vand.u32 2147483647, %v691
    %v710 = vand.u32 2147483647, %v692
    %v711 = vsub.f32 0.0, %v707
    %v712 = vsub.f32 0.0, %v708
    %v713 = vsub.f32 0.0, %v709
    %v714 = vsub.f32 0.0, %v710
    %v715 = vmul.f32 %v711, 1.442695
    %v716 = vpow.pop %v715
    %v717 = vmul.f32 %v712, 1.442695
    %v718 = vpow.pop %v717
    %v719 = vmul.f32 %v713, 1.442695
    %v720 = vpow.pop %v719
    %v721 = vmul.f32 %v714, 1.442695
    %v722 = vpow.pop %v721
    %v723 = vadd.f32 %v716, 1.0
    %v724 = vlog2.pop %v723
    %v725 = vmul.f32 %v724, 0.6931472
    %v726 = vmul.f32 -0.5, %v716
    %v727 = vadd.f32 %v726, 1.0
    %v728 = vmul.f32 %v727, %v716
    %v729 = vand.u32 2147483647, %v716
    %vm730 = vcmp.lt.f32.partialorder %v729, 0.0004427343
    %v731 = vsel %vm730, %v728, %v725
    %v732 = vadd.f32 %v718, 1.0
    %v733 = vlog2.pop %v732
    %v734 = vmul.f32 %v733, 0.6931472
    %v735 = vmul.f32 -0.5, %v718
    %v736 = vadd.f32 %v735, 1.0
    %v737 = vmul.f32 %v736, %v718
    %v738 = vand.u32 2147483647, %v718
    %vm739 = vcmp.lt.f32.partialorder %v738, 0.0004427343
    %v740 = vsel %vm739, %v737, %v734
    %v741 = vadd.f32 %v720, 1.0
    %v742 = vlog2.pop %v741
    %v743 = vmul.f32 %v742, 0.6931472
    %v744 = vmul.f32 -0.5, %v720
    %v745 = vadd.f32 %v744, 1.0
    %v746 = vmul.f32 %v745, %v720
    %v747 = vand.u32 2147483647, %v720
    %vm748 = vcmp.lt.f32.partialorder %v747, 0.0004427343
    %v749 = vsel %vm748, %v746, %v743
    %v750 = vadd.f32 %v722, 1.0
    %v751 = vlog2.pop %v750
    %v752 = vmul.f32 %v751, 0.6931472
    %v753 = vmul.f32 -0.5, %v722
    %v754 = vadd.f32 %v753, 1.0
    %v755 = vmul.f32 %v754, %v722
    %v756 = vand.u32 2147483647, %v722
    %vm757 = vcmp.lt.f32.partialorder %v756, 0.0004427343
    %v758 = vsel %vm757, %v755, %v752
    %v759 = vadd.f32 %v703, %v731
    %v760 = vadd.f32 %v704, %v740
    %v761 = vadd.f32 %v705, %v749
    %v762 = vadd.f32 %v706, %v758
    %v763 = vmax.f32 %v700, 0.0
    %v764 = vand.u32 2147483647, %v700
    %v765 = vsub.f32 0.0, %v764
    %v766 = vmul.f32 %v765, 1.442695
    %v767 = vpow.pop %v766
    %v768 = vadd.f32 %v767, 1.0
    %v769 = vlog2.pop %v768
    %v770 = vmul.f32 %v769, 0.6931472
    %v771 = vmul.f32 -0.5, %v767
    %v772 = vadd.f32 %v771, 1.0
    %v773 = vmul.f32 %v772, %v767
    %v774 = vand.u32 2147483647, %v767
    %vm775 = vcmp.lt.f32.partialorder %v774, 0.0004427343
    %v776 = vsel %vm775, %v773, %v770
    %v777 = vadd.f32 %v763, %v776
    %v778 = vmul.f32 %v759, %v694
    %v779 = vmul.f32 %v760, %v695
    %v780 = vmul.f32 %v761, %v696
    %v781 = vmul.f32 %v762, %v697
    %v782 = vadd.f32 %v684, %v778
    %v783 = vadd.f32 %v685, %v779
    %v784 = vadd.f32 %v686, %v780
    %v785 = vadd.f32 %v687, %v781
    %v786 = vmul.f32 %v777, %v702
    %v787 = vadd.f32 %v698, %v786
    %v789 = vlaneseq
    %v790 = vshrl.u32 %v789, 7
    %v791 = vsub.s32 0, %v790
    %v792 = vrot.slane %v787, %v791
    %v795 = vsel %vm375, %v683, 0
    %797 = vmatprep.subr.mxu0 0.0
    %798 = vmatpush1.msra.mxu0 0.0
    %799 = vmatprep.subr.mxu0 0.0
    %800 = vmatpush1.msra.mxu0 0.0
    %801 = vmatprep.subr.mxu0 0.0
    %802 = vmatpush1.msra.mxu0 0.0
    %803 = vmatprep.subr.mxu0 0.0
    %804 = vmatpush1.msra.mxu0 0.0
    %805 = vmatprep.subr.mxu0 0.0
    %806 = vmatpush1.msra.mxu0 0.0
    %807 = vmatprep.subr.mxu0 0.0
    %808 = vmatpush1.msra.mxu0 0.0
    %809 = vmatprep.subr.mxu0 0.0
    %810 = vmatpush1.msra.mxu0 0.0
    %811 = vmatprep.subr.mxu0 0.0
    %812 = vmatpush1.msra.mxu0 0.0
    %813 = vmatprep.subr.mxu0 0.0
    %814 = vmatpush1.msra.mxu0 0.0
    %815 = vmatprep.subr.mxu0 0.0
    %816 = vmatpush1.msra.mxu0 0.0
    %817 = vmatprep.subr.mxu0 0.0
    %818 = vmatpush1.msra.mxu0 0.0
    %819 = vmatprep.subr.mxu0 0.0
    %820 = vmatpush1.msra.mxu0 0.0
    %821 = vmatprep.subr.mxu0 0.0
    %822 = vmatpush1.msra.mxu0 %v785
    %823 = vmatprep.subr.mxu0 0.0
    %824 = vmatpush1.msra.mxu0 %v784
    %825 = vmatprep.subr.mxu0 0.0
    %826 = vmatpush1.msra.mxu0 %v783
    %827 = vmatprep.subr.mxu0 0.0
    %828 = vmatpush1.msra.mxu0 %v782
    %829 = vmatprep.subr.mxu0 0.0
    %830 = vmatpush2.msra.mxu0 0.0
    %831 = vmatprep.subr.mxu0 0.0
    %832 = vmatpush2.msra.mxu0 0.0
    %833 = vmatprep.subr.mxu0 0.0
    %834 = vmatpush2.msra.mxu0 0.0
    %835 = vmatprep.subr.mxu0 0.0
    %836 = vmatpush2.msra.mxu0 0.0
    %837 = vmatprep.subr.mxu0 0.0
    %838 = vmatpush2.msra.mxu0 0.0
    %839 = vmatprep.subr.mxu0 0.0
    %840 = vmatpush2.msra.mxu0 0.0
    %841 = vmatprep.subr.mxu0 0.0
    %842 = vmatpush2.msra.mxu0 0.0
    %843 = vmatprep.subr.mxu0 0.0
    %844 = vmatpush2.msra.mxu0 0.0
    %845 = vmatprep.subr.mxu0 0.0
    %846 = vmatpush2.msra.mxu0 0.0
    %847 = vmatprep.subr.mxu0 0.0
    %848 = vmatpush2.msra.mxu0 0.0
    %849 = vmatprep.subr.mxu0 0.0
    %850 = vmatpush2.msra.mxu0 0.0
    %851 = vmatprep.subr.mxu0 0.0
    %852 = vmatpush2.msra.mxu0 0.0
    %853 = vmatprep.subr.mxu0 0.0
    %854 = vmatpush2.msra.mxu0 0.0
    %855 = vmatprep.subr.mxu0 0.0
    %856 = vmatpush2.msra.mxu0 0.0
    %857 = vmatprep.subr.mxu0 0.0
    %858 = vmatpush2.msra.mxu0 0.0
    %859 = vmatprep.subr.mxu0 0.0
    %860 = vmatpush2.msra.mxu0 0.0
    %861 = vmatprep.mubr.f32.mxu0 0.0
    %862 = vmatmul.mubr.f32.gmra.mxu0 %v795
    %v863 = vpop.f32.mrf.mxu0
    %v864 = vadd.f32 %v792, %v863
    %v865 = vpop.f32.mrf.mxu0
    %866 = vdwg.mxu0
    %v867 = vadd.f32 %v759, 1e-08
    %v868 = vadd.f32 %v760, 1e-08
    %v869 = vadd.f32 %v761, 1e-08
    %v870 = vadd.f32 %v762, 1e-08
    %v871 = vlog2.pop %v867
    %v872 = vmul.f32 %v871, 0.6931472
    %v873 = vlog2.pop %v868
    %v874 = vmul.f32 %v873, 0.6931472
    %v875 = vlog2.pop %v869
    %v876 = vmul.f32 %v875, 0.6931472
    %v877 = vlog2.pop %v870
    %v878 = vmul.f32 %v877, 0.6931472
    %v879 = vsub.f32 -2.302585, %v872
    %v880 = vsub.f32 -2.302585, %v874
    %v881 = vsub.f32 -2.302585, %v876
    %v882 = vsub.f32 -2.302585, %v878
    %v883 = vmul.f32 %v867, %v867
    %v884 = vmul.f32 %v868, %v868
    %v885 = vmul.f32 %v869, %v869
    %v886 = vmul.f32 %v870, %v870
    %v887 = vmul.f32 %v684, %v684
    %v888 = vmul.f32 %v685, %v685
    %v889 = vmul.f32 %v686, %v686
    %v890 = vmul.f32 %v687, %v687
    %v891 = vadd.f32 %v883, %v887
    %v892 = vadd.f32 %v884, %v888
    %v893 = vadd.f32 %v885, %v889
    %v894 = vadd.f32 %v886, %v890
    %v895 = vmul.f32 %v891, 49.99999
    %v896 = vmul.f32 %v892, 49.99999
    %v897 = vmul.f32 %v893, 49.99999
    %v898 = vmul.f32 %v894, 49.99999
    %v899 = vadd.f32 %v879, %v895
    %v900 = vadd.f32 %v880, %v896
    %v901 = vadd.f32 %v881, %v897
    %v902 = vadd.f32 %v882, %v898
    %v903 = vsub.f32 %v899, 0.5
    %v904 = vsub.f32 %v900, 0.5
    %v905 = vsub.f32 %v901, 0.5
    %v906 = vsub.f32 %v902, 0.5
    %vm907 = vcmask 80896
    %v908 = vsel %vm907, %v903, 0.0
    %v909 = vsel %vm907, %v904, 0.0
    %v910 = vadd.f32 %v908, %v909
    %v911 = vsel %vm907, %v905, 0.0
    %v912 = vadd.f32 %v910, %v911
    %v913 = vsel %vm907, %v906, 0.0
    %v914 = vadd.f32 %v912, %v913
    %915 = vadd.xlane.f32.xlu0 %v914
    %v916 = vpop.xlane.xlu0 %915
    %v917 = vrot.slane %v916, 4
    %v918 = vadd.f32 %v916, %v917
    %v919 = vrot.slane %v918, 2
    %v920 = vadd.f32 %v918, %v919
    %v921 = vrot.slane %v920, 1
    %v922 = vadd.f32 %v920, %v921
    %s923 = vtos %v922
    %v924 = vadd.f32 %v777, 1e-08
    %v925 = vlog2.pop %v924
    %v926 = vmul.f32 %v925, 0.6931472
    %v927 = vsub.f32 -2.302585, %v926
    %v928 = vmul.f32 %v924, %v924
    %v929 = vmul.f32 %v698, %v698
    %v930 = vadd.f32 %v928, %v929
    %v931 = vmul.f32 %v930, 49.99999
    %v932 = vadd.f32 %v927, %v931
    %v933 = vsub.f32 %v932, 0.5
    %vm934 = vcmask 73728
    %v935 = vsel %vm934, %v933, 0.0
    %936 = vadd.xlane.f32.xlu0 %v935
    %v937 = vpop.xlane.xlu0 %936
    %v938 = vrot.slane %v937, 4
    %v939 = vadd.f32 %v937, %v938
    %v940 = vrot.slane %v939, 2
    %v941 = vadd.f32 %v939, %v940
    %v942 = vrot.slane %v941, 1
    %v943 = vadd.f32 %v941, %v942
    %s944 = vtos %v943
    %s945 = sadd.f32 %s923, %s944
    %946 = vst.msk [vmem:[#allocation2] sm:$0xff] %vm907, %v864
    %s947 = sadd.f32 %s421, %s682
    %s948 = sadd.f32 %s947, %s945
    %v949 = vstv %s948
    %vm950 = vcmask 0
    %951 = vst.msk [vmem:[#allocation4] sm:$0x1] %vm950, %v949
    // Predicated region
    $region30: #{bayesian_mlp_forward.1} parent=1 // pred_check
      _
    $region31: #{bayesian_mlp_forward.1} parent=1 // pred_check_branch
      %953 = sbr.rel (0) target = $region33
    $region32: #{bayesian_mlp_forward.1} parent=1 // pred_region
      %s955 = ssub.s32 128, 128
      %956 = vsyncadd [#allocation3], %s955
      %s958 = sshll.u32 [#allocation2], 4
      %s959 = int_to_ptr.vmem [resolvable:$true] %s958
      %961 = dma.vmem_to_hbm [thread:$0]  %s959, 128, %s7, [#allocation3]
    $region33: #{bayesian_mlp_forward.1} parent=1 // pred_fallthru
      _
    // Predicated region
    $region34: #{bayesian_mlp_forward.1} parent=1 // pred_check
      _
    $region35: #{bayesian_mlp_forward.1} parent=1 // pred_check_branch
      %963 = sbr.rel (0) target = $region37
    $region36: #{bayesian_mlp_forward.1} parent=1 // pred_region
      %s965 = ssub.s32 16, 16
      %966 = vsyncadd [#allocation5], %s965
      %s968 = sshll.u32 [#allocation4], 4
      %s969 = int_to_ptr.vmem [resolvable:$true] %s968
      %971 = dma.vmem_to_hbm [thread:$0]  %s969, 16, %s8, [#allocation5]
    $region37: #{bayesian_mlp_forward.1} parent=1 // pred_fallthru
      _
    // Predicated region
    $region38: #{bayesian_mlp_forward.1} parent=1 // pred_check
      _
    $region39: #{bayesian_mlp_forward.1} parent=1 // pred_check_branch
      %973 = sbr.rel (0) target = $region41
    $region40: #{bayesian_mlp_forward.1} parent=1 // pred_region
      %974 = dma.done [#allocation3], 128
    $region41: #{bayesian_mlp_forward.1} parent=1 // pred_fallthru
      _
    // Predicated region
    $region42: #{bayesian_mlp_forward.1} parent=1 // pred_check
      _
    $region43: #{bayesian_mlp_forward.1} parent=1 // pred_check_branch
      %976 = sbr.rel (0) target = $region45
    $region44: #{bayesian_mlp_forward.1} parent=1 // pred_region
      %977 = dma.done [#allocation5], 16
    $region45: #{bayesian_mlp_forward.1} parent=1 // pred_fallthru
      _
    %978 = vsyncpa [#allocation3], 1
    %979 = vsyncpa [#allocation5], 1

</llo_original>
